<compile_context>
chip_gen: v7x
topology: tpu7x:2x2x1
jax: 0.10.0
libtpu: 0.0.40
codegen_flags: <defaults>
</compile_context>

<pallas_src>
import functools

import jax
import jax.numpy as jnp
from jax.experimental import pallas as pl
from jax.experimental.pallas import tpu as pltpu


def _sepconv_kernel(x_ref, w_ref, b_ref, o_ref, *, K, dilation):
    # x_ref: (1, C_in, L_in_pad)   un-repeated, zero-padded input (compute dtype)
    # w_ref: (K, C_out, C_in)      folded per-tap weights (compute dtype)
    # b_ref: (C_out, 1)            folded bias, f32
    # o_ref: (1, C_out, L_out_pad) lane-dense output block
    C_out = o_ref.shape[1]
    L = o_ref.shape[2]                      # multiple of 128 (lane-dense)
    x = x_ref[0]                            # (C_in, L_in_pad)

    acc = jnp.zeros((C_out, L), dtype=jnp.float32)
    for k in range(K):                      # K is small & static: unrolled
        off = k * dilation
        acc = acc + jnp.dot(w_ref[k], x[:, off:off + L],
                            preferred_element_type=jnp.float32)
    o_ref[0] = (acc + b_ref[...]).astype(o_ref.dtype)


def separable_conv1d(x, w_dw, b_dw, w_pw, b_pw, *, kernel_size, depth_multiplier,
                     dilation=1, padding="same", compute_dtype=jnp.bfloat16):
    """x: (N, C_in, L) float32.  Returns (N, C_out, L_out).

    Parameter shapes mirror nn.Conv1d:
      w_dw: (C_in*dm, 1, K), b_dw: (C_in*dm,)
      w_pw: (C_out, C_in*dm, 1), b_pw: (C_out,)
    """
    N, C_in, L = x.shape
    K = kernel_size
    dm = depth_multiplier
    Cdm = C_in * dm
    C_out = w_pw.shape[0]
    assert w_dw.shape == (Cdm, 1, K), w_dw.shape
    assert w_pw.shape == (C_out, Cdm, 1), w_pw.shape

    if padding == "same":
        if K % 2 == 0:
            # PyTorch pads asymmetrically for even K with padding='same'.
            raise NotImplementedError("even kernel_size with 'same' padding")
        pad = (K - 1) // 2 * dilation
    else:
        pad = int(padding)

    halo = dilation * (K - 1)
    L_out = L + 2 * pad - halo
    # Lane-dense output length (multiple of 128) -> unmasked vector stores.
    L_out_pad = max(128, ((L_out + 127) // 128) * 128)
    L_in_pad = L_out_pad + halo

    # ---- Fold depth multiplier + depthwise taps + both biases (f32, tiny) ----
    wdw3 = w_dw.reshape(C_in, dm, K).astype(jnp.float32)        # [c, d, k]
    wpw3 = w_pw.reshape(C_out, C_in, dm).astype(jnp.float32)    # [o, c, d]
    w_eff = jnp.einsum("ocd,cdk->koc", wpw3, wdw3)              # (K, C_out, C_in)
    b_eff = (jnp.einsum("ocd,cd->o", wpw3,
                        b_dw.reshape(C_in, dm).astype(jnp.float32))
             + b_pw.astype(jnp.float32)).reshape(C_out, 1)      # (C_out, 1)

    # 'same' left pad + zero right pad up to the lane-dense input length.
    # (extra output columns read zeros -> equal b_eff -> sliced off below)
    x_pad = jnp.pad(x, ((0, 0), (0, 0), (pad, L_in_pad - L - pad)))
    x_pad = x_pad.astype(compute_dtype)
    w_eff = w_eff.astype(compute_dtype)

    kernel = functools.partial(_sepconv_kernel, K=K, dilation=dilation)

    out = pl.pallas_call(
        kernel,
        out_shape=jax.ShapeDtypeStruct((N, C_out, L_out_pad), x.dtype),
        grid_spec=pltpu.PrefetchScalarGridSpec(
            num_scalar_prefetch=0,
            grid=(N,),
            in_specs=[
                pl.BlockSpec((1, C_in, L_in_pad), lambda n: (n, 0, 0)),
                pl.BlockSpec((K, C_out, C_in), lambda n: (0, 0, 0)),
                pl.BlockSpec((C_out, 1), lambda n: (0, 0)),
            ],
            out_specs=pl.BlockSpec((1, C_out, L_out_pad), lambda n: (n, 0, 0)),
        ),
        compiler_params=pltpu.CompilerParams(
            dimension_semantics=("parallel",)),
    )(x_pad, w_eff, b_eff)

    return out[:, :, :L_out]


def _reference(x, w_dw, b_dw, w_pw, b_pw, *, kernel_size, depth_multiplier,
               dilation=1):
    """Pure-JAX, *un-folded* reference matching PyTorch Conv1d semantics
    (stride=1, 'same', odd K). Independently validates the weight folding."""
    N, C_in, L = x.shape
    K = kernel_size
    dm = depth_multiplier
    Cdm = C_in * dm
    pad = (K - 1) // 2 * dilation
    x_pad = jnp.pad(x, ((0, 0), (0, 0), (pad, pad)))
    L_out = L + 2 * pad - dilation * (K - 1)
    x_rep = jnp.repeat(x_pad, dm, axis=1)
    wdw2 = w_dw.reshape(Cdm, K)
    dw = jnp.zeros((N, Cdm, L_out), jnp.float32)
    for k in range(K):
        off = k * dilation
        dw = dw + x_rep[:, :, off:off + L_out] * wdw2[None, :, k:k + 1]
    dw = dw + b_dw.reshape(1, Cdm, 1)
    out = jnp.einsum("oc,ncl->nol", w_pw.reshape(-1, Cdm), dw) + b_pw.reshape(1, -1, 1)
    return out


if __name__ == "__main__":
    # Small shapes consistent with the module's conv branch (NCL layout after
    # the module's Permute of the (N, L, C) input).
    N, C_in, L = 2, 4, 16
    C_out, K, dm = 8, 3, 2
    Cdm = C_in * dm

    key = jax.random.PRNGKey(0)
    k1, k2, k3, k4, k5 = jax.random.split(key, 5)

    x = jax.random.normal(k1, (N, C_in, L), dtype=jnp.float32)
    w_dw = jax.random.normal(k2, (Cdm, 1, K), dtype=jnp.float32) * 0.3
    b_dw = jax.random.normal(k3, (Cdm,), dtype=jnp.float32) * 0.1
    w_pw = jax.random.normal(k4, (C_out, Cdm, 1), dtype=jnp.float32) * 0.3
    b_pw = jax.random.normal(k5, (C_out,), dtype=jnp.float32) * 0.1

    ref = _reference(x, w_dw, b_dw, w_pw, b_pw,
                     kernel_size=K, depth_multiplier=dm)

    # f32 compute path: tight check against the un-folded reference.
    out_f32 = separable_conv1d(x, w_dw, b_dw, w_pw, b_pw,
                               kernel_size=K, depth_multiplier=dm,
                               compute_dtype=jnp.float32)
    out_f32 = jax.block_until_ready(out_f32)
    assert out_f32.shape == (N, C_out, L), out_f32.shape
    assert jnp.allclose(out_f32, ref, atol=1e-4, rtol=1e-4), "f32 mismatch vs reference"

    # bf16 compute path (default; halves HBM traffic): loose check.
    out_bf16 = separable_conv1d(x, w_dw, b_dw, w_pw, b_pw,
                                kernel_size=K, depth_multiplier=dm,
                                compute_dtype=jnp.bfloat16)
    out_bf16 = jax.block_until_ready(out_bf16)
    assert out_bf16.shape == (N, C_out, L), out_bf16.shape
    assert jnp.allclose(out_bf16, ref, atol=5e-2, rtol=5e-2), "bf16 mismatch vs reference"

    print("KERNEL_OK")
</pallas_src>

<mosaic_0001>
module attributes {stable_mosaic.version = 11 : i64} {
  func.func @_sepconv_kernel(%arg0: i32, %arg1: memref<1x4x130xf32, #tpu.memory_space<vmem>>, %arg2: memref<3x8x4xf32, #tpu.memory_space<vmem>>, %arg3: memref<8x1xf32, #tpu.memory_space<vmem>>, %arg4: memref<1x8x128xf32, #tpu.memory_space<vmem>>) attributes {dimension_semantics = [#tpu.dimension_semantics<parallel>], iteration_bounds = array<i64: 2>, scalar_prefetch = 0 : i64, scratch_operands = 0 : i64, tpu.core_type = #tpu.core_type<tc>, window_params = [{transform_indices = @transform_0, window_bounds = array<i64: 1, 4, 130>}, {pipeline_mode = #tpu.pipeline_mode<synchronous>, transform_indices = @transform_1, window_bounds = array<i64: 3, 8, 4>}, {pipeline_mode = #tpu.pipeline_mode<synchronous>, transform_indices = @transform_2, window_bounds = array<i64: 8, 1>}, {transform_indices = @transform_3, window_bounds = array<i64: 1, 8, 128>}]} {
    %c0 = arith.constant 0 : index
    %c0_0 = arith.constant 0 : index
    %c0_1 = arith.constant 0 : index
    %0 = vector.load %arg1[%c0, %c0_0, %c0_1] : memref<1x4x130xf32, #tpu.memory_space<vmem>>, vector<1x4x130xf32>
    %1 = vector.shape_cast %0 : vector<1x4x130xf32> to vector<4x130xf32>
    %cst = arith.constant 0.000000e+00 : f32
    %2 = vector.broadcast %cst : f32 to vector<8x128xf32>
    %c0_2 = arith.constant 0 : index
    %c0_3 = arith.constant 0 : index
    %c0_4 = arith.constant 0 : index
    %3 = vector.load %arg2[%c0_2, %c0_3, %c0_4] : memref<3x8x4xf32, #tpu.memory_space<vmem>>, vector<1x8x4xf32>
    %4 = vector.shape_cast %3 : vector<1x8x4xf32> to vector<8x4xf32>
    %5 = vector.extract_strided_slice %1 {offsets = [0, 0], sizes = [4, 128], strides = [1, 1]} : vector<4x130xf32> to vector<4x128xf32>
    %cst_5 = arith.constant dense<0.000000e+00> : vector<8x128xf32>
    %6 = tpu.matmul %4, %5, %cst_5 {dimension_numbers = #tpu.dot_dimension_numbers<[1], [0], [0], [1], [0, 0, 1, 1], [], []>} : vector<8x4xf32>, vector<4x128xf32>, vector<8x128xf32> -> vector<8x128xf32>
    %7 = arith.addf %2, %6 : vector<8x128xf32>
    %c1 = arith.constant 1 : index
    %c0_6 = arith.constant 0 : index
    %c0_7 = arith.constant 0 : index
    %8 = vector.load %arg2[%c1, %c0_6, %c0_7] : memref<3x8x4xf32, #tpu.memory_space<vmem>>, vector<1x8x4xf32>
    %9 = vector.shape_cast %8 : vector<1x8x4xf32> to vector<8x4xf32>
    %10 = vector.extract_strided_slice %1 {offsets = [0, 1], sizes = [4, 128], strides = [1, 1]} : vector<4x130xf32> to vector<4x128xf32>
    %cst_8 = arith.constant dense<0.000000e+00> : vector<8x128xf32>
    %11 = tpu.matmul %9, %10, %cst_8 {dimension_numbers = #tpu.dot_dimension_numbers<[1], [0], [0], [1], [0, 0, 1, 1], [], []>} : vector<8x4xf32>, vector<4x128xf32>, vector<8x128xf32> -> vector<8x128xf32>
    %12 = arith.addf %7, %11 : vector<8x128xf32>
    %c2 = arith.constant 2 : index
    %c0_9 = arith.constant 0 : index
    %c0_10 = arith.constant 0 : index
    %13 = vector.load %arg2[%c2, %c0_9, %c0_10] : memref<3x8x4xf32, #tpu.memory_space<vmem>>, vector<1x8x4xf32>
    %14 = vector.shape_cast %13 : vector<1x8x4xf32> to vector<8x4xf32>
    %15 = vector.extract_strided_slice %1 {offsets = [0, 2], sizes = [4, 128], strides = [1, 1]} : vector<4x130xf32> to vector<4x128xf32>
    %cst_11 = arith.constant dense<0.000000e+00> : vector<8x128xf32>
    %16 = tpu.matmul %14, %15, %cst_11 {dimension_numbers = #tpu.dot_dimension_numbers<[1], [0], [0], [1], [0, 0, 1, 1], [], []>} : vector<8x4xf32>, vector<4x128xf32>, vector<8x128xf32> -> vector<8x128xf32>
    %17 = arith.addf %12, %16 : vector<8x128xf32>
    %c0_12 = arith.constant 0 : index
    %c0_13 = arith.constant 0 : index
    %18 = vector.load %arg3[%c0_12, %c0_13] : memref<8x1xf32, #tpu.memory_space<vmem>>, vector<8x1xf32>
    %19 = vector.broadcast %18 : vector<8x1xf32> to vector<8x128xf32>
    %20 = arith.addf %17, %19 : vector<8x128xf32>
    %c0_14 = arith.constant 0 : index
    %c0_15 = arith.constant 0 : index
    %c0_16 = arith.constant 0 : index
    %21 = vector.load %arg4[%c0_14, %c0_15, %c0_16] : memref<1x8x128xf32, #tpu.memory_space<vmem>>, vector<1x8x128xf32>
    %22 = vector.shape_cast %21 : vector<1x8x128xf32> to vector<8x128xf32>
    %23 = vector.shape_cast %20 : vector<8x128xf32> to vector<1x8x128xf32>
    tpu.vector_store %arg4[%c0_14, %c0_15, %c0_16], %23 {strides = array<i32>} : memref<1x8x128xf32, #tpu.memory_space<vmem>>, vector<1x8x128xf32>,
    return
  }
  func.func @transform_0(%arg0: i32) -> (i32, i32, i32) {
    %c0_i32 = arith.constant 0 : i32
    %c0_i32_0 = arith.constant 0 : i32
    %c0_i32_1 = arith.constant 0 : i32
    return %arg0, %c0_i32, %c0_i32_0 : i32, i32, i32
  }
  func.func @transform_1(%arg0: i32) -> (i32, i32, i32) {
    %c0_i32 = arith.constant 0 : i32
    %c0_i32_0 = arith.constant 0 : i32
    %c0_i32_1 = arith.constant 0 : i32
    %c0_i32_2 = arith.constant 0 : i32
    return %c0_i32, %c0_i32_0, %c0_i32_1 : i32, i32, i32
  }
  func.func @transform_2(%arg0: i32) -> (i32, i32) {
    %c0_i32 = arith.constant 0 : i32
    %c0_i32_0 = arith.constant 0 : i32
    %c0_i32_1 = arith.constant 0 : i32
    return %c0_i32, %c0_i32_0 : i32, i32
  }
  func.func @transform_3(%arg0: i32) -> (i32, i32, i32) {
    %c0_i32 = arith.constant 0 : i32
    %c0_i32_0 = arith.constant 0 : i32
    %c0_i32_1 = arith.constant 0 : i32
    return %arg0, %c0_i32, %c0_i32_0 : i32, i32, i32
  }
}

</mosaic_0001>

<llo_original>
// kernel: tpu_custom_call.1
$region0: #{tpu_custom_call.1}
  #allocation0 [shape = 'u32[]', space=smem, size = 0x4, offset = 0x4, fixed_abs, tag = 'smem constant byte address 0x4 - core index']
  #allocation1 [shape = 'u32[144,128]{1,0:T(1,128)}', space=vmem, size = 0x12000, scoped, tag = 'internal scratch']
  %s0 = inlined_call_operand.vmem [shape: f32[2,4,130], index: 0, kind: input, shape index: {}]
  %s1 = inlined_call_operand.vmem [shape: f32[3,8,4], index: 1, kind: input, shape index: {}]
  %s2 = inlined_call_operand.vmem [shape: f32[8,1], index: 2, kind: input, shape index: {}]
  %s3 = inlined_call_operand.hbm [shape: f32[2,8,128], index: 3, kind: output, shape index: {}]
  %s4 = sld [smem:[#allocation0]]
  $region45: #{tpu_custom_call.1} parent=0
    _
  %s6 = ssub.s32 1, %s4
  %s7 = scalar_select 0, %s6, %s4
  $region1: #{tpu_custom_call.1} parent=0
    #allocation2 [shape = 'u8[8192]{0}', space=vmem, size = 0x2000, scoped, tag = 'output window, operand 0']
    #allocation3 [shape = 's32[2]{0}', space=sflag, size = 0x8, scoped, tag = 'scoped memory for tpu_custom_call.1']
    %8 = vsyncpa [#allocation3], 0
    %s9 = scalar_lea.sflag [#allocation3], 1
    %10 = vsyncpa %s9, 0
    loop: start=0, step=1, limit=4
    $region2: #{tpu_custom_call.1} parent=1 // loop_pre_header
      _
    $region3: #{tpu_custom_call.1} parent=1 // loop_header
      %s12 = sphi 0, %s16
      %p13 = scmp.ge.s32.totalorder %s12, 4
      %s22 = sphi 0, %s24
      %s25 = sphi 0, %s22
      %s26 = sphi 0, %s25
      %s42 = sphi 0, %s26
      %s46 = sphi 0, %s46
      %s48 = sphi 0, %s46
      %s49 = sphi 0, %s48
      %s63 = sphi 0, %s49
      %s67 = sphi 0, %s67
      %s69 = sphi 0, %s67
      %s70 = sphi 0, %s69
      %s84 = sphi 0, %s70
      %s90 = sphi 0, %s92
      %s93 = sphi 0, %s90
      %s94 = sphi 0, %s93
      %s110 = sphi 0, %s94
    $region4: #{tpu_custom_call.1} parent=1 // loop_header_branch
      %15 = sbr.rel (%p13) target = $region8
    $region5: #{tpu_custom_call.1} parent=1 // loop_body
      %s17 = ssub.s32 %s12, 1
      %s18 = ssub.s32 %s12, 2
      %s19 = sadd.s32 %s12, 1
      %s20 = ssub.s32 %s12, %s19
      %p21 = scmp.eq.s32.totalorder %s20, 0
      %s23 = sadd.s32 %s22, 1
      %s24 = scalar_select %p21, %s22, %s23
      %p27 = pneg %p21
      %p28 = scmp.eq.s32.totalorder %s12, 1
      %p29 = por %p27, %p28
      %p30 = scmp.ne.s32.totalorder %s22, %s25
      %p31 = scmp.eq.s32.totalorder %s12, 0
      %p32 = por %p30, %p31
      %p33 = scmp.ne.s32.totalorder %s22, %s25
      %p34 = scmp.eq.s32.totalorder %s17, 1
      %p35 = por %p33, %p34
      %p36 = scmp.ne.s32.totalorder %s25, %s26
      %p37 = scmp.eq.s32.totalorder %s17, 0
      %p38 = por %p36, %p37
      %p39 = scmp.ne.s32.totalorder %s25, %s26
      %p40 = scmp.eq.s32.totalorder %s18, 1
      %p41 = por %p39, %p40
      %p43 = scmp.ne.s32.totalorder %s26, %s42
      %p44 = scmp.eq.s32.totalorder %s18, 0
      %p45 = por %p43, %p44
      %s47 = sadd.s32 %s46, 1
      %p50 = scmp.eq.s32.totalorder %s12, 1
      %p51 = scmp.ne.s32.totalorder %s46, %s48
      %p52 = scmp.eq.s32.totalorder %s12, 0
      %p53 = por %p51, %p52
      %p54 = scmp.ne.s32.totalorder %s46, %s48
      %p55 = scmp.eq.s32.totalorder %s17, 1
      %p56 = por %p54, %p55
      %p57 = scmp.ne.s32.totalorder %s48, %s49
      %p58 = scmp.eq.s32.totalorder %s17, 0
      %p59 = por %p57, %p58
      %p60 = scmp.ne.s32.totalorder %s48, %s49
      %p61 = scmp.eq.s32.totalorder %s18, 1
      %p62 = por %p60, %p61
      %p64 = scmp.ne.s32.totalorder %s49, %s63
      %p65 = scmp.eq.s32.totalorder %s18, 0
      %p66 = por %p64, %p65
      %s68 = sadd.s32 %s67, 1
      %p71 = scmp.eq.s32.totalorder %s12, 1
      %p72 = scmp.ne.s32.totalorder %s67, %s69
      %p73 = scmp.eq.s32.totalorder %s12, 0
      %p74 = por %p72, %p73
      %p75 = scmp.ne.s32.totalorder %s67, %s69
      %p76 = scmp.eq.s32.totalorder %s17, 1
      %p77 = por %p75, %p76
      %p78 = scmp.ne.s32.totalorder %s69, %s70
      %p79 = scmp.eq.s32.totalorder %s17, 0
      %p80 = por %p78, %p79
      %p81 = scmp.ne.s32.totalorder %s69, %s70
      %p82 = scmp.eq.s32.totalorder %s18, 1
      %p83 = por %p81, %p82
      %p85 = scmp.ne.s32.totalorder %s70, %s84
      %p86 = scmp.eq.s32.totalorder %s18, 0
      %p87 = por %p85, %p86
      %s88 = ssub.s32 %s12, %s19
      %p89 = scmp.eq.s32.totalorder %s88, 0
      %s91 = sadd.s32 %s90, 1
      %s92 = scalar_select %p89, %s90, %s91
      %p95 = pneg %p89
      %p96 = scmp.eq.s32.totalorder %s12, 1
      %p97 = por %p95, %p96
      %p98 = scmp.ne.s32.totalorder %s90, %s93
      %p99 = scmp.eq.s32.totalorder %s12, 0
      %p100 = por %p98, %p99
      %p101 = scmp.ne.s32.totalorder %s90, %s93
      %p102 = scmp.eq.s32.totalorder %s17, 1
      %p103 = por %p101, %p102
      %p104 = scmp.ne.s32.totalorder %s93, %s94
      %p105 = scmp.eq.s32.totalorder %s17, 0
      %p106 = por %p104, %p105
      %p107 = scmp.ne.s32.totalorder %s93, %s94
      %p108 = scmp.eq.s32.totalorder %s18, 1
      %p109 = por %p107, %p108
      %p111 = scmp.ne.s32.totalorder %s94, %s110
      %p112 = scmp.eq.s32.totalorder %s18, 0
      %p113 = por %p111, %p112
      %p114 = scmp.le.s32.totalorder 1, %s12
      %p115 = scmp.lt.s32.totalorder %s12, 3
      %p116 = pnand %p114, %p115
      %p117 = pneg %p116
      // Predicated region
      $region9: #{tpu_custom_call.1} parent=5 // pred_check
        _
      $region10: #{tpu_custom_call.1} parent=5 // pred_check_branch
        %119 = sbr.rel (%p116) target = $region12
      $region11: #{tpu_custom_call.1} parent=5 // pred_region
        %s120 = ssub.s32 %s12, 1
        // Predicated region
        $region13: #{tpu_custom_call.1} parent=11 // pred_check
          %p121 = pneg %p59
        $region14: #{tpu_custom_call.1} parent=11 // pred_check_branch
          %123 = sbr.rel (%p121) target = $region16
        $region15: #{tpu_custom_call.1} parent=11 // pred_region
          _
        $region16: #{tpu_custom_call.1} parent=11 // pred_fallthru
          _
        // Predicated region
        $region17: #{tpu_custom_call.1} parent=11 // pred_check
          %p124 = pneg %p80
        $region18: #{tpu_custom_call.1} parent=11 // pred_check_branch
          %126 = sbr.rel (%p124) target = $region20
        $region19: #{tpu_custom_call.1} parent=11 // pred_region
          _
        $region20: #{tpu_custom_call.1} parent=11 // pred_fallthru
          _
      $region12: #{tpu_custom_call.1} parent=5 // pred_fallthru
        _
      %p127 = scmp.lt.s32.totalorder %s12, 2
      // Predicated region
      $region21: #{tpu_custom_call.1} parent=5 // pred_check
        %p128 = pneg %p127
      $region22: #{tpu_custom_call.1} parent=5 // pred_check_branch
        %130 = sbr.rel (%p128) target = $region24
      $region23: #{tpu_custom_call.1} parent=5 // pred_region
        // Predicated region
        $region25: #{tpu_custom_call.1} parent=23 // pred_check
          %p131 = pneg %p32
        $region26: #{tpu_custom_call.1} parent=23 // pred_check_branch
          %133 = sbr.rel (%p131) target = $region28
        $region27: #{tpu_custom_call.1} parent=23 // pred_region
          %p134 = scmp.lt.s32.totalorder %s12, 1
          %s135 = scalar_select %p134, %s12, 1
          %s136 = smul.addr %s135, 2
          %s137 = smul.addr %s136, 4
          %s138 = scalar_lea.vmem %s0, %s137
        $region28: #{tpu_custom_call.1} parent=23 // pred_fallthru
          _
      $region24: #{tpu_custom_call.1} parent=5 // pred_fallthru
        _
      %p139 = scmp.le.s32.totalorder 1, %s12
      %p140 = scmp.lt.s32.totalorder %s12, 3
      %p141 = pnand %p139, %p140
      %p142 = pneg %p141
      // Predicated region
      $region29: #{tpu_custom_call.1} parent=5 // pred_check
        _
      $region30: #{tpu_custom_call.1} parent=5 // pred_check_branch
        %144 = sbr.rel (%p141) target = $region32
      $region31: #{tpu_custom_call.1} parent=5 // pred_region
        %s145 = ssub.s32 %s12, 1
        %p146 = scmp.lt.s32.totalorder %s17, 1
        %s147 = scalar_select %p146, %s17, 1
        %s148 = smul.addr %s147, 2
        %s149 = smul.addr %s148, 4
        %s150 = scalar_lea.vmem %s0, %s149
        %p151 = pneg %p38
        %p152 = pneg %p35
        %p153 = pneg %p59
        %p154 = pneg %p56
        %p155 = pneg %p80
        %p156 = pneg %p77
        %p157 = pneg %p106
        %p158 = pneg %p103
        %s159 = sand.u32 %s93, 1
        %s160 = scalar_lea.sflag [#allocation3], %s159
        %s161 = sand.u32 %s93, 1
        %s162 = smul.addr %s161, 8
        %s163 = scalar_lea.vmem [#allocation2], %s162
        %p164 = scmp.lt.s32.totalorder %s17, 1
        %s165 = scalar_select %p164, %s17, 1
        %s166 = smul.addr %s165, 2
        %s167 = smul.addr %s166, 4
        %s168 = scalar_lea.vmem %s0, %s167
        %v169 = vld [vmem:[%s168] sm:$0xff]
        %v170 = vld [vmem:[%s1] sm:$0xff]
        %s171 = scalar_lea.vmem %s1, 8
        %v172 = vld [vmem:[%s171] sm:$0xff]
        %v174 = vcombine.high %v169, %v169
        %175 = vrot.lane.b32.xlu0 %v169, 127
        %v176 = vpop.permute.xlu0 %175
        %177 = vrot.lane.b32.xlu0 %v174, 127
        %v178 = vpop.permute.xlu0 %177
        %vm179 = vcmask 1039360
        %v180 = vsel %vm179, %v176, %v178
        %vm181 = vcmask 31744
        %v183 = vsel %vm181, %v172, 0
        %vm185 = vcmask 1043456
        %v186 = vsel %vm185, %v180, 0
        %188 = vmatprep.subr.mxu0 0.0
        %189 = vmatpush1.msra.mxu0 %v186
        %190 = vmatprep.subr.mxu0 0.0
        %191 = vmatpush1.msra.mxu0 0.0
        %192 = vmatprep.subr.mxu0 0.0
        %193 = vmatpush1.msra.mxu0 0.0
        %194 = vmatprep.subr.mxu0 0.0
        %195 = vmatpush1.msra.mxu0 0.0
        %196 = vmatprep.subr.mxu0 0.0
        %197 = vmatpush1.msra.mxu0 0.0
        %198 = vmatprep.subr.mxu0 0.0
        %199 = vmatpush1.msra.mxu0 0.0
        %200 = vmatprep.subr.mxu0 0.0
        %201 = vmatpush1.msra.mxu0 0.0
        %202 = vmatprep.subr.mxu0 0.0
        %203 = vmatpush1.msra.mxu0 0.0
        %204 = vmatprep.subr.mxu0 0.0
        %205 = vmatpush1.msra.mxu0 0.0
        %206 = vmatprep.subr.mxu0 0.0
        %207 = vmatpush1.msra.mxu0 0.0
        %208 = vmatprep.subr.mxu0 0.0
        %209 = vmatpush1.msra.mxu0 0.0
        %210 = vmatprep.subr.mxu0 0.0
        %211 = vmatpush1.msra.mxu0 0.0
        %212 = vmatprep.subr.mxu0 0.0
        %213 = vmatpush1.msra.mxu0 0.0
        %214 = vmatprep.subr.mxu0 0.0
        %215 = vmatpush1.msra.mxu0 0.0
        %216 = vmatprep.subr.mxu0 0.0
        %217 = vmatpush1.msra.mxu0 0.0
        %218 = vmatprep.subr.mxu0 0.0
        %219 = vmatpush1.msra.mxu0 0.0
        %220 = vmatprep.subr.mxu0 0.0
        %221 = vmatpush1.msra.mxu0 0.0
        %222 = vmatprep.subr.mxu0 0.0
        %223 = vmatpush1.msra.mxu0 0.0
        %224 = vmatprep.subr.mxu0 0.0
        %225 = vmatpush1.msra.mxu0 0.0
        %226 = vmatprep.subr.mxu0 0.0
        %227 = vmatpush1.msra.mxu0 0.0
        %228 = vmatprep.subr.mxu0 0.0
        %229 = vmatpush1.msra.mxu0 0.0
        %230 = vmatprep.subr.mxu0 0.0
        %231 = vmatpush1.msra.mxu0 0.0
        %232 = vmatprep.subr.mxu0 0.0
        %233 = vmatpush1.msra.mxu0 0.0
        %234 = vmatprep.subr.mxu0 0.0
        %235 = vmatpush1.msra.mxu0 0.0
        %236 = vmatprep.subr.mxu0 0.0
        %237 = vmatpush1.msra.mxu0 0.0
        %238 = vmatprep.subr.mxu0 0.0
        %239 = vmatpush1.msra.mxu0 0.0
        %240 = vmatprep.subr.mxu0 0.0
        %241 = vmatpush1.msra.mxu0 0.0
        %242 = vmatprep.subr.mxu0 0.0
        %243 = vmatpush1.msra.mxu0 0.0
        %244 = vmatprep.subr.mxu0 0.0
        %245 = vmatpush1.msra.mxu0 0.0
        %246 = vmatprep.subr.mxu0 0.0
        %247 = vmatpush1.msra.mxu0 0.0
        %248 = vmatprep.subr.mxu0 0.0
        %249 = vmatpush1.msra.mxu0 0.0
        %250 = vmatprep.subr.mxu0 0.0
        %251 = vmatpush1.msra.mxu0 0.0
        %252 = vmatprep.mubr.f32.mxu0 0.0
        %253 = vmatmul.mubr.f32.gmra.mrb[0].mxu0 %v183
        %v254 = vpop.f32.mrb[0].mxu0
        %v255 = vadd.f32 0.0, %v254
        %v256 = vpop.f32.mrb[0].mxu0
        %257 = vdwg.mxu0
        %v259 = vsel %vm181, %v170, 0
        %v261 = vsel %vm185, %v169, 0
        %263 = vmatprep.subr.mxu0 0.0
        %264 = vmatpush1.msra.mxu0 %v261
        %265 = vmatprep.subr.mxu0 0.0
        %266 = vmatpush1.msra.mxu0 0.0
        %267 = vmatprep.subr.mxu0 0.0
        %268 = vmatpush1.msra.mxu0 0.0
        %269 = vmatprep.subr.mxu0 0.0
        %270 = vmatpush1.msra.mxu0 0.0
        %271 = vmatprep.subr.mxu0 0.0
        %272 = vmatpush1.msra.mxu0 0.0
        %273 = vmatprep.subr.mxu0 0.0
        %274 = vmatpush1.msra.mxu0 0.0
        %275 = vmatprep.subr.mxu0 0.0
        %276 = vmatpush1.msra.mxu0 0.0
        %277 = vmatprep.subr.mxu0 0.0
        %278 = vmatpush1.msra.mxu0 0.0
        %279 = vmatprep.subr.mxu0 0.0
        %280 = vmatpush1.msra.mxu0 0.0
        %281 = vmatprep.subr.mxu0 0.0
        %282 = vmatpush1.msra.mxu0 0.0
        %283 = vmatprep.subr.mxu0 0.0
        %284 = vmatpush1.msra.mxu0 0.0
        %285 = vmatprep.subr.mxu0 0.0
        %286 = vmatpush1.msra.mxu0 0.0
        %287 = vmatprep.subr.mxu0 0.0
        %288 = vmatpush1.msra.mxu0 0.0
        %289 = vmatprep.subr.mxu0 0.0
        %290 = vmatpush1.msra.mxu0 0.0
        %291 = vmatprep.subr.mxu0 0.0
        %292 = vmatpush1.msra.mxu0 0.0
        %293 = vmatprep.subr.mxu0 0.0
        %294 = vmatpush1.msra.mxu0 0.0
        %295 = vmatprep.subr.mxu0 0.0
        %296 = vmatpush1.msra.mxu0 0.0
        %297 = vmatprep.subr.mxu0 0.0
        %298 = vmatpush1.msra.mxu0 0.0
        %299 = vmatprep.subr.mxu0 0.0
        %300 = vmatpush1.msra.mxu0 0.0
        %301 = vmatprep.subr.mxu0 0.0
        %302 = vmatpush1.msra.mxu0 0.0
        %303 = vmatprep.subr.mxu0 0.0
        %304 = vmatpush1.msra.mxu0 0.0
        %305 = vmatprep.subr.mxu0 0.0
        %306 = vmatpush1.msra.mxu0 0.0
        %307 = vmatprep.subr.mxu0 0.0
        %308 = vmatpush1.msra.mxu0 0.0
        %309 = vmatprep.subr.mxu0 0.0
        %310 = vmatpush1.msra.mxu0 0.0
        %311 = vmatprep.subr.mxu0 0.0
        %312 = vmatpush1.msra.mxu0 0.0
        %313 = vmatprep.subr.mxu0 0.0
        %314 = vmatpush1.msra.mxu0 0.0
        %315 = vmatprep.subr.mxu0 0.0
        %316 = vmatpush1.msra.mxu0 0.0
        %317 = vmatprep.subr.mxu0 0.0
        %318 = vmatpush1.msra.mxu0 0.0
        %319 = vmatprep.subr.mxu0 0.0
        %320 = vmatpush1.msra.mxu0 0.0
        %321 = vmatprep.subr.mxu0 0.0
        %322 = vmatpush1.msra.mxu0 0.0
        %323 = vmatprep.subr.mxu0 0.0
        %324 = vmatpush1.msra.mxu0 0.0
        %325 = vmatprep.subr.mxu0 0.0
        %326 = vmatpush1.msra.mxu0 0.0
        %327 = vmatprep.mubr.f32.mxu0 0.0
        %328 = vmatmul.mubr.f32.gmra.mrb[0].mxu0 %v259
        %v329 = vpop.f32.mrb[0].mxu0
        %v330 = vadd.f32 %v255, %v329
        %v331 = vpop.f32.mrb[0].mxu0
        %332 = vdwg.mxu0
        %s333 = scalar_lea.vmem %s1, 16
        %v334 = vld [vmem:[%s333] sm:$0xff]
        %335 = vrot.lane.b32.xlu0 %v169, 126
        %v336 = vpop.permute.xlu0 %335
        %337 = vrot.lane.b32.xlu0 %v174, 126
        %v338 = vpop.permute.xlu0 %337
        %vm339 = vcmask 1031168
        %v340 = vsel %vm339, %v336, %v338
        %v342 = vsel %vm181, %v334, 0
        %v344 = vsel %vm185, %v340, 0
        %346 = vmatprep.subr.mxu0 0.0
        %347 = vmatpush1.msra.mxu0 %v344
        %348 = vmatprep.subr.mxu0 0.0
        %349 = vmatpush1.msra.mxu0 0.0
        %350 = vmatprep.subr.mxu0 0.0
        %351 = vmatpush1.msra.mxu0 0.0
        %352 = vmatprep.subr.mxu0 0.0
        %353 = vmatpush1.msra.mxu0 0.0
        %354 = vmatprep.subr.mxu0 0.0
        %355 = vmatpush1.msra.mxu0 0.0
        %356 = vmatprep.subr.mxu0 0.0
        %357 = vmatpush1.msra.mxu0 0.0
        %358 = vmatprep.subr.mxu0 0.0
        %359 = vmatpush1.msra.mxu0 0.0
        %360 = vmatprep.subr.mxu0 0.0
        %361 = vmatpush1.msra.mxu0 0.0
        %362 = vmatprep.subr.mxu0 0.0
        %363 = vmatpush1.msra.mxu0 0.0
        %364 = vmatprep.subr.mxu0 0.0
        %365 = vmatpush1.msra.mxu0 0.0
        %366 = vmatprep.subr.mxu0 0.0
        %367 = vmatpush1.msra.mxu0 0.0
        %368 = vmatprep.subr.mxu0 0.0
        %369 = vmatpush1.msra.mxu0 0.0
        %370 = vmatprep.subr.mxu0 0.0
        %371 = vmatpush1.msra.mxu0 0.0
        %372 = vmatprep.subr.mxu0 0.0
        %373 = vmatpush1.msra.mxu0 0.0
        %374 = vmatprep.subr.mxu0 0.0
        %375 = vmatpush1.msra.mxu0 0.0
        %376 = vmatprep.subr.mxu0 0.0
        %377 = vmatpush1.msra.mxu0 0.0
        %378 = vmatprep.subr.mxu0 0.0
        %379 = vmatpush1.msra.mxu0 0.0
        %380 = vmatprep.subr.mxu0 0.0
        %381 = vmatpush1.msra.mxu0 0.0
        %382 = vmatprep.subr.mxu0 0.0
        %383 = vmatpush1.msra.mxu0 0.0
        %384 = vmatprep.subr.mxu0 0.0
        %385 = vmatpush1.msra.mxu0 0.0
        %386 = vmatprep.subr.mxu0 0.0
        %387 = vmatpush1.msra.mxu0 0.0
        %388 = vmatprep.subr.mxu0 0.0
        %389 = vmatpush1.msra.mxu0 0.0
        %390 = vmatprep.subr.mxu0 0.0
        %391 = vmatpush1.msra.mxu0 0.0
        %392 = vmatprep.subr.mxu0 0.0
        %393 = vmatpush1.msra.mxu0 0.0
        %394 = vmatprep.subr.mxu0 0.0
        %395 = vmatpush1.msra.mxu0 0.0
        %396 = vmatprep.subr.mxu0 0.0
        %397 = vmatpush1.msra.mxu0 0.0
        %398 = vmatprep.subr.mxu0 0.0
        %399 = vmatpush1.msra.mxu0 0.0
        %400 = vmatprep.subr.mxu0 0.0
        %401 = vmatpush1.msra.mxu0 0.0
        %402 = vmatprep.subr.mxu0 0.0
        %403 = vmatpush1.msra.mxu0 0.0
        %404 = vmatprep.subr.mxu0 0.0
        %405 = vmatpush1.msra.mxu0 0.0
        %406 = vmatprep.subr.mxu0 0.0
        %407 = vmatpush1.msra.mxu0 0.0
        %408 = vmatprep.subr.mxu0 0.0
        %409 = vmatpush1.msra.mxu0 0.0
        %410 = vmatprep.mubr.f32.mxu0 0.0
        %411 = vmatmul.mubr.f32.gmra.mrb[0].mxu0 %v342
        %v412 = vpop.f32.mrb[0].mxu0
        %v413 = vadd.f32 0.0, %v412
        %v414 = vpop.f32.mrb[0].mxu0
        %415 = vdwg.mxu0
        %v416 = vadd.f32 %v330, %v413
        %v417 = vld [vmem:[%s2] sm:$0xff]
        %419 = vset.pattern.permute.xlu0 0
        %420 = vperm.xlu0 %419, %v417
        %v421 = vpop.permute.xlu0 %420
        %v423 = vadd.f32 %v416, %v421
        %424 = vst [vmem:[%s163] sm:$0xff] %v423
        %s425 = sand.u32 %s93, 1
        %s426 = scalar_lea.sflag [#allocation3], %s425
        %s427 = sand.u32 %s93, 1
        %s428 = smul.addr %s427, 8
        %s429 = scalar_lea.vmem [#allocation2], %s428
        // Predicated region
        $region33: #{tpu_custom_call.1} parent=31 // pred_check
          %p430 = pneg %p103
        $region34: #{tpu_custom_call.1} parent=31 // pred_check_branch
          %432 = sbr.rel (%p430) target = $region36
        $region35: #{tpu_custom_call.1} parent=31 // pred_region
          %s434 = ssub.s32 128, 128
          %435 = vsyncadd %s426, %s434
          %s436 = smul.addr %s17, 128
          %s437 = scalar_lea.hbm %s3, %s436
          %s439 = sshll.u32 %s429, 4
          %s440 = int_to_ptr.vmem [resolvable:$true] %s439
          %442 = dma.vmem_to_hbm [thread:$0]  %s440, 128, %s437, %s426
        $region36: #{tpu_custom_call.1} parent=31 // pred_fallthru
          _
      $region32: #{tpu_custom_call.1} parent=5 // pred_fallthru
        _
      %p443 = scmp.le.s32.totalorder 2, %s12
      // Predicated region
      $region37: #{tpu_custom_call.1} parent=5 // pred_check
        %p444 = pneg %p443
      $region38: #{tpu_custom_call.1} parent=5 // pred_check_branch
        %446 = sbr.rel (%p444) target = $region40
      $region39: #{tpu_custom_call.1} parent=5 // pred_region
        %s447 = ssub.s32 %s12, 2
        // Predicated region
        $region41: #{tpu_custom_call.1} parent=39 // pred_check
          %p448 = pneg %p109
        $region42: #{tpu_custom_call.1} parent=39 // pred_check_branch
          %450 = sbr.rel (%p448) target = $region44
        $region43: #{tpu_custom_call.1} parent=39 // pred_region
          %s451 = sand.u32 %s94, 1
          %s452 = scalar_lea.sflag [#allocation3], %s451
          %s453 = sand.u32 %s94, 1
          %s454 = smul.addr %s453, 8
          %s455 = scalar_lea.vmem [#allocation2], %s454
          %456 = dma.done %s452, 128
        $region44: #{tpu_custom_call.1} parent=39 // pred_fallthru
          _
      $region40: #{tpu_custom_call.1} parent=5 // pred_fallthru
        _
    $region6: #{tpu_custom_call.1} parent=1 // loop_footer
      %s16 = sadd.s32 1, %s12
    $region7: #{tpu_custom_call.1} parent=1 // loop_footer_branch
      %11 = sbr.rel target = $region3
    $region8: #{tpu_custom_call.1} parent=1 // loop_exit
      _
    %457 = vsyncpa [#allocation3], 1
    %s458 = scalar_lea.sflag [#allocation3], 1
    %459 = vsyncpa %s458, 1

</llo_original>
